<compile_context>
chip_gen: v6e
topology: v6e:2x2x1
jax: 0.10.0
libtpu: 0.0.40
codegen_flags: <defaults>
</compile_context>

<pallas_src>
import functools

import jax
import jax.numpy as jnp
import numpy as np
from jax.experimental import pallas as pl
from jax.experimental.pallas import tpu as pltpu

# SNN constants (FSVAE snn_layers globals)
VTH = 0.2       # spiking threshold
TAU = 0.25      # membrane decay
ALPHA = 2.0     # tdBatchNorm alpha
EPS = 1e-5      # BN eps
LANE = 128      # TPU lane width
SUBLANE = 8     # f32 sublane count


def _round_up(n, m):
    return ((n + m - 1) // m) * m


def prior_kernel(x_ref, w_ref, t_ref, out_ref, *, B, T):
    """Whole-batch forward of the 3-layer tdLinear/BN/LIF stack.

    x_ref  : (T*B, DP) bf16, time-major rows (row = t*B + b), shifted + padded spikes.
    w_ref  : (3, DP, DP) bf16, BN scale folded into columns, zero-padded.
    t_ref  : (3, 1, DP)  f32 folded bias + BN shift.
    out_ref: (T*B, DP)   bf16 final-layer spikes (lane-dense, padded).
    B here is the sublane-padded batch, so every per-step slab is tile-aligned.
    """

    def layer(h, l):
        # One matmul over all B*T rows; bf16 operands, f32 accumulation (MXU).
        y = jnp.dot(h, w_ref[l], preferred_element_type=jnp.float32)
        y = y + t_ref[l]                                   # folded bias + BN shift
        d = y.shape[-1]
        # LIF recurrence: serial over time, vectorized over batch.
        # Membrane u and (1 - o) math in f32; emitted spikes in bf16.
        u = jnp.zeros((B, d), jnp.float32)
        o = jnp.zeros((B, d), jnp.float32)
        outs = []
        for t in range(T):   # T small & static -> unrolled
            # TODO(synk): if T grows, switch to lax.fori_loop(..., unroll=True)
            # with pl.multiple_of(t*B, 8) on the slab start.
            u = TAU * u * (1.0 - o) + y[t * B:(t + 1) * B, :]
            mask = u > VTH
            o = mask.astype(jnp.float32)
            outs.append(mask.astype(jnp.bfloat16))
        return jnp.concatenate(outs, axis=0)               # (T*B, DP) bf16 value

    h = layer(x_ref[...], 0)
    h = layer(h, 1)
    out_ref[...] = layer(h, 2)                             # single lane-dense store


def prior_forward(z, params, k):
    """z: (B, C, T) -> p_z: (B, C, k, T)  (float32 probabilities-as-spikes)."""
    W, Tb = params                       # (3, DP, DP) bf16, (3, 1, DP) f32
    B, C, T = z.shape
    DP = W.shape[-1]
    Bp = _round_up(B, SUBLANE)
    Ck = C * k

    # p(z_t | z_<t): time shift + batch pad + lane pad fused into one lax.pad
    # (time lo=+1 / hi=-1 implements cat([0, z[..., :-1]]) on the T axis).
    zt = jnp.transpose(z, (2, 0, 1)).astype(jnp.bfloat16)            # (T, B, C)
    x = jax.lax.pad(zt, jnp.zeros((), jnp.bfloat16),
                    ((1, -1, 0), (0, Bp - B, 0), (0, DP - C, 0)))    # (T, Bp, DP)
    x = x.reshape(T * Bp, DP)                                        # row = t*Bp + b

    vmem = pl.BlockSpec(memory_space=pltpu.MemorySpace.VMEM)
    out = pl.pallas_call(
        functools.partial(prior_kernel, B=Bp, T=T),
        out_shape=jax.ShapeDtypeStruct((T * Bp, DP), jnp.bfloat16),
        in_specs=[vmem, vmem, vmem],
        out_specs=vmem,
    )(x, W, Tb)                                                      # (T*Bp, DP)

    # drop batch/lane padding; (T,B,C*k) -> (B,C*k,T) -> (B,C,k,T)  (torch .view)
    out = out.reshape(T, Bp, DP)[:, :B, :Ck].astype(jnp.float32)
    return jnp.transpose(out, (1, 2, 0)).reshape(B, C, k, T)


def init_params(key, C, k):
    """Deterministic synthetic parameters, packed for the kernel.

    Per layer: W' = W^T * s with the eval-mode tdBatchNorm scale s folded into
    the columns (bf16), shift = (b - mean)*s + beta (f32). All layers are
    zero-padded to a common DP x DP and stacked -> (3, DP, DP) and (3, 1, DP).
    """
    dims = [(C, 2 * C), (2 * C, 4 * C), (4 * C, C * k)]
    DP = _round_up(max(C, 2 * C, 4 * C, C * k), LANE)
    ws, ts = [], []
    for i, (cin, cout) in enumerate(dims):
        ks = jax.random.split(jax.random.fold_in(key, i), 6)
        Wl = jax.random.normal(ks[0], (cout, cin), jnp.float32) / np.sqrt(cin)
        b = 0.1 * jax.random.normal(ks[1], (cout,), jnp.float32)
        gamma = 1.0 + 0.1 * jax.random.normal(ks[2], (cout,), jnp.float32)
        beta = 0.1 * jax.random.normal(ks[3], (cout,), jnp.float32)
        r_mean = 0.05 * jax.random.normal(ks[4], (cout,), jnp.float32)
        r_var = 1.0 + 0.1 * jax.random.uniform(ks[5], (cout,), jnp.float32)
        # eval tdBatchNorm: bn(y) = ALPHA*VTH*gamma*(y - mean)/sqrt(var+eps) + beta
        s = ALPHA * VTH * gamma / jnp.sqrt(r_var + EPS)               # (cout,)
        w_folded = Wl.T * s[None, :]                                  # (cin, cout)
        shift = (b - r_mean) * s + beta                               # (cout,)
        w_p = jnp.zeros((DP, DP), jnp.float32).at[:cin, :cout].set(w_folded)
        t_p = jnp.zeros((1, DP), jnp.float32).at[:, :cout].set(shift)
        ws.append(w_p.astype(jnp.bfloat16))
        ts.append(t_p)
    return jnp.stack(ws), jnp.stack(ts)        # (3, DP, DP) bf16, (3, 1, DP) f32


def reference_forward(z, params, k):
    """Pure-JAX reference of the same forward pass (same folded bf16 weights)."""
    W, Tb = params
    B, C, T = z.shape
    DP = W.shape[-1]
    h = jnp.transpose(z, (2, 0, 1)).astype(jnp.bfloat16)              # (T, B, C)
    h = jnp.pad(h, ((0, 0), (0, 0), (0, DP - C)))
    h = jnp.concatenate([jnp.zeros((1, B, DP), jnp.bfloat16), h[:-1]], axis=0)
    for l in range(3):
        y = jnp.einsum('tbc,cd->tbd', h, W[l],
                       preferred_element_type=jnp.float32) + Tb[l][None]
        u = jnp.zeros((B, DP), jnp.float32)
        o = jnp.zeros((B, DP), jnp.float32)
        outs = []
        for t in range(T):
            u = TAU * u * (1.0 - o) + y[t]
            mask = u > VTH
            o = mask.astype(jnp.float32)
            outs.append(mask.astype(jnp.bfloat16))
        h = jnp.stack(outs, axis=0)                                   # (T, B, DP)
    out = h[:, :, :C * k].astype(jnp.float32)                         # (T, B, Ck)
    return jnp.transpose(out, (1, 2, 0)).reshape(B, C, k, T)


if __name__ == "__main__":
    key = jax.random.PRNGKey(0)
    B, C, T, K = 2, 4, 8, 20          # latent_dim=4, n_steps=8, k=20
    kz, kp = jax.random.split(key)
    # latent spikes sampled from the "posterior": binary {0, 1}
    z = (jax.random.uniform(kz, (B, C, T)) > 0.5).astype(jnp.float32)
    params = init_params(kp, C, K)

    p_z = jax.block_until_ready(prior_forward(z, params, K))
    assert p_z.shape == (B, C, K, T), p_z.shape

    ref = reference_forward(z, params, K)
    np.testing.assert_allclose(np.asarray(p_z), np.asarray(ref), atol=1e-5)
    print("KERNEL_OK")
</pallas_src>

<mosaic_0001>
module attributes {stable_mosaic.version = 11 : i64} {
  func.func @prior_kernel(%arg0: memref<64x128xbf16, #tpu.memory_space<vmem>>, %arg1: memref<3x128x128xbf16, #tpu.memory_space<vmem>>, %arg2: memref<3x1x128xf32, #tpu.memory_space<vmem>>, %arg3: memref<64x128xbf16, #tpu.memory_space<vmem>>) attributes {dimension_semantics = [], scalar_prefetch = 0 : i64, scratch_operands = 0 : i64, tpu.core_type = #tpu.core_type<tc>} {
    %c0 = arith.constant 0 : index
    %c0_0 = arith.constant 0 : index
    %0 = vector.load %arg0[%c0, %c0_0] : memref<64x128xbf16, #tpu.memory_space<vmem>>, vector<64x128xbf16>
    %c0_1 = arith.constant 0 : index
    %c0_2 = arith.constant 0 : index
    %c0_3 = arith.constant 0 : index
    %1 = vector.load %arg1[%c0_1, %c0_2, %c0_3] : memref<3x128x128xbf16, #tpu.memory_space<vmem>>, vector<1x128x128xbf16>
    %2 = vector.shape_cast %1 : vector<1x128x128xbf16> to vector<128x128xbf16>
    %cst = arith.constant dense<0.000000e+00> : vector<64x128xf32>
    %3 = tpu.matmul %0, %2, %cst {dimension_numbers = #tpu.dot_dimension_numbers<[1], [0], [0], [1], [0, 0, 1, 1], [], []>} : vector<64x128xbf16>, vector<128x128xbf16>, vector<64x128xf32> -> vector<64x128xf32>
    %c0_4 = arith.constant 0 : index
    %c0_5 = arith.constant 0 : index
    %c0_6 = arith.constant 0 : index
    %4 = vector.load %arg2[%c0_4, %c0_5, %c0_6] : memref<3x1x128xf32, #tpu.memory_space<vmem>>, vector<1x1x128xf32>
    %5 = vector.shape_cast %4 : vector<1x1x128xf32> to vector<1x128xf32>
    %6 = vector.broadcast %5 : vector<1x128xf32> to vector<64x128xf32>
    %7 = arith.addf %3, %6 : vector<64x128xf32>
    %cst_7 = arith.constant 0.000000e+00 : f32
    %8 = vector.broadcast %cst_7 : f32 to vector<8x128xf32>
    %cst_8 = arith.constant 0.000000e+00 : f32
    %9 = vector.broadcast %cst_8 : f32 to vector<8x128xf32>
    %cst_9 = arith.constant 2.500000e-01 : f32
    %10 = vector.broadcast %cst_9 : f32 to vector<8x128xf32>
    %11 = arith.mulf %10, %8 : vector<8x128xf32>
    %cst_10 = arith.constant 1.000000e+00 : f32
    %12 = vector.broadcast %cst_10 : f32 to vector<8x128xf32>
    %13 = arith.subf %12, %9 : vector<8x128xf32>
    %14 = arith.mulf %11, %13 : vector<8x128xf32>
    %15 = vector.extract_strided_slice %7 {offsets = [0, 0], sizes = [8, 128], strides = [1, 1]} : vector<64x128xf32> to vector<8x128xf32>
    %16 = arith.addf %14, %15 : vector<8x128xf32>
    %cst_11 = arith.constant 2.000000e-01 : f32
    %17 = vector.broadcast %cst_11 : f32 to vector<8x128xf32>
    %18 = arith.cmpf ogt, %16, %17 : vector<8x128xf32>
    %19 = arith.extui %18 : vector<8x128xi1> to vector<8x128xi32>
    %20 = arith.sitofp %19 : vector<8x128xi32> to vector<8x128xf32>
    %21 = arith.extui %18 : vector<8x128xi1> to vector<8x128xi32>
    %22 = arith.sitofp %21 : vector<8x128xi32> to vector<8x128xf32>
    %23 = arith.truncf %22 : vector<8x128xf32> to vector<8x128xbf16>
    %cst_12 = arith.constant 2.500000e-01 : f32
    %24 = vector.broadcast %cst_12 : f32 to vector<8x128xf32>
    %25 = arith.mulf %24, %16 : vector<8x128xf32>
    %cst_13 = arith.constant 1.000000e+00 : f32
    %26 = vector.broadcast %cst_13 : f32 to vector<8x128xf32>
    %27 = arith.subf %26, %20 : vector<8x128xf32>
    %28 = arith.mulf %25, %27 : vector<8x128xf32>
    %29 = vector.extract_strided_slice %7 {offsets = [8, 0], sizes = [8, 128], strides = [1, 1]} : vector<64x128xf32> to vector<8x128xf32>
    %30 = arith.addf %28, %29 : vector<8x128xf32>
    %cst_14 = arith.constant 2.000000e-01 : f32
    %31 = vector.broadcast %cst_14 : f32 to vector<8x128xf32>
    %32 = arith.cmpf ogt, %30, %31 : vector<8x128xf32>
    %33 = arith.extui %32 : vector<8x128xi1> to vector<8x128xi32>
    %34 = arith.sitofp %33 : vector<8x128xi32> to vector<8x128xf32>
    %35 = arith.extui %32 : vector<8x128xi1> to vector<8x128xi32>
    %36 = arith.sitofp %35 : vector<8x128xi32> to vector<8x128xf32>
    %37 = arith.truncf %36 : vector<8x128xf32> to vector<8x128xbf16>
    %cst_15 = arith.constant 2.500000e-01 : f32
    %38 = vector.broadcast %cst_15 : f32 to vector<8x128xf32>
    %39 = arith.mulf %38, %30 : vector<8x128xf32>
    %cst_16 = arith.constant 1.000000e+00 : f32
    %40 = vector.broadcast %cst_16 : f32 to vector<8x128xf32>
    %41 = arith.subf %40, %34 : vector<8x128xf32>
    %42 = arith.mulf %39, %41 : vector<8x128xf32>
    %43 = vector.extract_strided_slice %7 {offsets = [16, 0], sizes = [8, 128], strides = [1, 1]} : vector<64x128xf32> to vector<8x128xf32>
    %44 = arith.addf %42, %43 : vector<8x128xf32>
    %cst_17 = arith.constant 2.000000e-01 : f32
    %45 = vector.broadcast %cst_17 : f32 to vector<8x128xf32>
    %46 = arith.cmpf ogt, %44, %45 : vector<8x128xf32>
    %47 = arith.extui %46 : vector<8x128xi1> to vector<8x128xi32>
    %48 = arith.sitofp %47 : vector<8x128xi32> to vector<8x128xf32>
    %49 = arith.extui %46 : vector<8x128xi1> to vector<8x128xi32>
    %50 = arith.sitofp %49 : vector<8x128xi32> to vector<8x128xf32>
    %51 = arith.truncf %50 : vector<8x128xf32> to vector<8x128xbf16>
    %cst_18 = arith.constant 2.500000e-01 : f32
    %52 = vector.broadcast %cst_18 : f32 to vector<8x128xf32>
    %53 = arith.mulf %52, %44 : vector<8x128xf32>
    %cst_19 = arith.constant 1.000000e+00 : f32
    %54 = vector.broadcast %cst_19 : f32 to vector<8x128xf32>
    %55 = arith.subf %54, %48 : vector<8x128xf32>
    %56 = arith.mulf %53, %55 : vector<8x128xf32>
    %57 = vector.extract_strided_slice %7 {offsets = [24, 0], sizes = [8, 128], strides = [1, 1]} : vector<64x128xf32> to vector<8x128xf32>
    %58 = arith.addf %56, %57 : vector<8x128xf32>
    %cst_20 = arith.constant 2.000000e-01 : f32
    %59 = vector.broadcast %cst_20 : f32 to vector<8x128xf32>
    %60 = arith.cmpf ogt, %58, %59 : vector<8x128xf32>
    %61 = arith.extui %60 : vector<8x128xi1> to vector<8x128xi32>
    %62 = arith.sitofp %61 : vector<8x128xi32> to vector<8x128xf32>
    %63 = arith.extui %60 : vector<8x128xi1> to vector<8x128xi32>
    %64 = arith.sitofp %63 : vector<8x128xi32> to vector<8x128xf32>
    %65 = arith.truncf %64 : vector<8x128xf32> to vector<8x128xbf16>
    %cst_21 = arith.constant 2.500000e-01 : f32
    %66 = vector.broadcast %cst_21 : f32 to vector<8x128xf32>
    %67 = arith.mulf %66, %58 : vector<8x128xf32>
    %cst_22 = arith.constant 1.000000e+00 : f32
    %68 = vector.broadcast %cst_22 : f32 to vector<8x128xf32>
    %69 = arith.subf %68, %62 : vector<8x128xf32>
    %70 = arith.mulf %67, %69 : vector<8x128xf32>
    %71 = vector.extract_strided_slice %7 {offsets = [32, 0], sizes = [8, 128], strides = [1, 1]} : vector<64x128xf32> to vector<8x128xf32>
    %72 = arith.addf %70, %71 : vector<8x128xf32>
    %cst_23 = arith.constant 2.000000e-01 : f32
    %73 = vector.broadcast %cst_23 : f32 to vector<8x128xf32>
    %74 = arith.cmpf ogt, %72, %73 : vector<8x128xf32>
    %75 = arith.extui %74 : vector<8x128xi1> to vector<8x128xi32>
    %76 = arith.sitofp %75 : vector<8x128xi32> to vector<8x128xf32>
    %77 = arith.extui %74 : vector<8x128xi1> to vector<8x128xi32>
    %78 = arith.sitofp %77 : vector<8x128xi32> to vector<8x128xf32>
    %79 = arith.truncf %78 : vector<8x128xf32> to vector<8x128xbf16>
    %cst_24 = arith.constant 2.500000e-01 : f32
    %80 = vector.broadcast %cst_24 : f32 to vector<8x128xf32>
    %81 = arith.mulf %80, %72 : vector<8x128xf32>
    %cst_25 = arith.constant 1.000000e+00 : f32
    %82 = vector.broadcast %cst_25 : f32 to vector<8x128xf32>
    %83 = arith.subf %82, %76 : vector<8x128xf32>
    %84 = arith.mulf %81, %83 : vector<8x128xf32>
    %85 = vector.extract_strided_slice %7 {offsets = [40, 0], sizes = [8, 128], strides = [1, 1]} : vector<64x128xf32> to vector<8x128xf32>
    %86 = arith.addf %84, %85 : vector<8x128xf32>
    %cst_26 = arith.constant 2.000000e-01 : f32
    %87 = vector.broadcast %cst_26 : f32 to vector<8x128xf32>
    %88 = arith.cmpf ogt, %86, %87 : vector<8x128xf32>
    %89 = arith.extui %88 : vector<8x128xi1> to vector<8x128xi32>
    %90 = arith.sitofp %89 : vector<8x128xi32> to vector<8x128xf32>
    %91 = arith.extui %88 : vector<8x128xi1> to vector<8x128xi32>
    %92 = arith.sitofp %91 : vector<8x128xi32> to vector<8x128xf32>
    %93 = arith.truncf %92 : vector<8x128xf32> to vector<8x128xbf16>
    %cst_27 = arith.constant 2.500000e-01 : f32
    %94 = vector.broadcast %cst_27 : f32 to vector<8x128xf32>
    %95 = arith.mulf %94, %86 : vector<8x128xf32>
    %cst_28 = arith.constant 1.000000e+00 : f32
    %96 = vector.broadcast %cst_28 : f32 to vector<8x128xf32>
    %97 = arith.subf %96, %90 : vector<8x128xf32>
    %98 = arith.mulf %95, %97 : vector<8x128xf32>
    %99 = vector.extract_strided_slice %7 {offsets = [48, 0], sizes = [8, 128], strides = [1, 1]} : vector<64x128xf32> to vector<8x128xf32>
    %100 = arith.addf %98, %99 : vector<8x128xf32>
    %cst_29 = arith.constant 2.000000e-01 : f32
    %101 = vector.broadcast %cst_29 : f32 to vector<8x128xf32>
    %102 = arith.cmpf ogt, %100, %101 : vector<8x128xf32>
    %103 = arith.extui %102 : vector<8x128xi1> to vector<8x128xi32>
    %104 = arith.sitofp %103 : vector<8x128xi32> to vector<8x128xf32>
    %105 = arith.extui %102 : vector<8x128xi1> to vector<8x128xi32>
    %106 = arith.sitofp %105 : vector<8x128xi32> to vector<8x128xf32>
    %107 = arith.truncf %106 : vector<8x128xf32> to vector<8x128xbf16>
    %cst_30 = arith.constant 2.500000e-01 : f32
    %108 = vector.broadcast %cst_30 : f32 to vector<8x128xf32>
    %109 = arith.mulf %108, %100 : vector<8x128xf32>
    %cst_31 = arith.constant 1.000000e+00 : f32
    %110 = vector.broadcast %cst_31 : f32 to vector<8x128xf32>
    %111 = arith.subf %110, %104 : vector<8x128xf32>
    %112 = arith.mulf %109, %111 : vector<8x128xf32>
    %113 = vector.extract_strided_slice %7 {offsets = [56, 0], sizes = [8, 128], strides = [1, 1]} : vector<64x128xf32> to vector<8x128xf32>
    %114 = arith.addf %112, %113 : vector<8x128xf32>
    %cst_32 = arith.constant 2.000000e-01 : f32
    %115 = vector.broadcast %cst_32 : f32 to vector<8x128xf32>
    %116 = arith.cmpf ogt, %114, %115 : vector<8x128xf32>
    %117 = arith.extui %116 : vector<8x128xi1> to vector<8x128xi32>
    %118 = arith.sitofp %117 : vector<8x128xi32> to vector<8x128xf32>
    %119 = arith.truncf %118 : vector<8x128xf32> to vector<8x128xbf16>
    %120 = tpu.concatenate %23, %37, %51, %65, %79, %93, %107, %119 in 0 : vector<8x128xbf16>, vector<8x128xbf16>, vector<8x128xbf16>, vector<8x128xbf16>, vector<8x128xbf16>, vector<8x128xbf16>, vector<8x128xbf16>, vector<8x128xbf16> -> vector<64x128xbf16>
    %c1 = arith.constant 1 : index
    %c0_33 = arith.constant 0 : index
    %c0_34 = arith.constant 0 : index
    %121 = vector.load %arg1[%c1, %c0_33, %c0_34] : memref<3x128x128xbf16, #tpu.memory_space<vmem>>, vector<1x128x128xbf16>
    %122 = vector.shape_cast %121 : vector<1x128x128xbf16> to vector<128x128xbf16>
    %cst_35 = arith.constant dense<0.000000e+00> : vector<64x128xf32>
    %123 = tpu.matmul %120, %122, %cst_35 {dimension_numbers = #tpu.dot_dimension_numbers<[1], [0], [0], [1], [0, 0, 1, 1], [], []>} : vector<64x128xbf16>, vector<128x128xbf16>, vector<64x128xf32> -> vector<64x128xf32>
    %c1_36 = arith.constant 1 : index
    %c0_37 = arith.constant 0 : index
    %c0_38 = arith.constant 0 : index
    %124 = vector.load %arg2[%c1_36, %c0_37, %c0_38] : memref<3x1x128xf32, #tpu.memory_space<vmem>>, vector<1x1x128xf32>
    %125 = vector.shape_cast %124 : vector<1x1x128xf32> to vector<1x128xf32>
    %126 = vector.broadcast %125 : vector<1x128xf32> to vector<64x128xf32>
    %127 = arith.addf %123, %126 : vector<64x128xf32>
    %cst_39 = arith.constant 0.000000e+00 : f32
    %128 = vector.broadcast %cst_39 : f32 to vector<8x128xf32>
    %cst_40 = arith.constant 0.000000e+00 : f32
    %129 = vector.broadcast %cst_40 : f32 to vector<8x128xf32>
    %cst_41 = arith.constant 2.500000e-01 : f32
    %130 = vector.broadcast %cst_41 : f32 to vector<8x128xf32>
    %131 = arith.mulf %130, %128 : vector<8x128xf32>
    %cst_42 = arith.constant 1.000000e+00 : f32
    %132 = vector.broadcast %cst_42 : f32 to vector<8x128xf32>
    %133 = arith.subf %132, %129 : vector<8x128xf32>
    %134 = arith.mulf %131, %133 : vector<8x128xf32>
    %135 = vector.extract_strided_slice %127 {offsets = [0, 0], sizes = [8, 128], strides = [1, 1]} : vector<64x128xf32> to vector<8x128xf32>
    %136 = arith.addf %134, %135 : vector<8x128xf32>
    %cst_43 = arith.constant 2.000000e-01 : f32
    %137 = vector.broadcast %cst_43 : f32 to vector<8x128xf32>
    %138 = arith.cmpf ogt, %136, %137 : vector<8x128xf32>
    %139 = arith.extui %138 : vector<8x128xi1> to vector<8x128xi32>
    %140 = arith.sitofp %139 : vector<8x128xi32> to vector<8x128xf32>
    %141 = arith.extui %138 : vector<8x128xi1> to vector<8x128xi32>
    %142 = arith.sitofp %141 : vector<8x128xi32> to vector<8x128xf32>
    %143 = arith.truncf %142 : vector<8x128xf32> to vector<8x128xbf16>
    %cst_44 = arith.constant 2.500000e-01 : f32
    %144 = vector.broadcast %cst_44 : f32 to vector<8x128xf32>
    %145 = arith.mulf %144, %136 : vector<8x128xf32>
    %cst_45 = arith.constant 1.000000e+00 : f32
    %146 = vector.broadcast %cst_45 : f32 to vector<8x128xf32>
    %147 = arith.subf %146, %140 : vector<8x128xf32>
    %148 = arith.mulf %145, %147 : vector<8x128xf32>
    %149 = vector.extract_strided_slice %127 {offsets = [8, 0], sizes = [8, 128], strides = [1, 1]} : vector<64x128xf32> to vector<8x128xf32>
    %150 = arith.addf %148, %149 : vector<8x128xf32>
    %cst_46 = arith.constant 2.000000e-01 : f32
    %151 = vector.broadcast %cst_46 : f32 to vector<8x128xf32>
    %152 = arith.cmpf ogt, %150, %151 : vector<8x128xf32>
    %153 = arith.extui %152 : vector<8x128xi1> to vector<8x128xi32>
    %154 = arith.sitofp %153 : vector<8x128xi32> to vector<8x128xf32>
    %155 = arith.extui %152 : vector<8x128xi1> to vector<8x128xi32>
    %156 = arith.sitofp %155 : vector<8x128xi32> to vector<8x128xf32>
    %157 = arith.truncf %156 : vector<8x128xf32> to vector<8x128xbf16>
    %cst_47 = arith.constant 2.500000e-01 : f32
    %158 = vector.broadcast %cst_47 : f32 to vector<8x128xf32>
    %159 = arith.mulf %158, %150 : vector<8x128xf32>
    %cst_48 = arith.constant 1.000000e+00 : f32
    %160 = vector.broadcast %cst_48 : f32 to vector<8x128xf32>
    %161 = arith.subf %160, %154 : vector<8x128xf32>
    %162 = arith.mulf %159, %161 : vector<8x128xf32>
    %163 = vector.extract_strided_slice %127 {offsets = [16, 0], sizes = [8, 128], strides = [1, 1]} : vector<64x128xf32> to vector<8x128xf32>
    %164 = arith.addf %162, %163 : vector<8x128xf32>
    %cst_49 = arith.constant 2.000000e-01 : f32
    %165 = vector.broadcast %cst_49 : f32 to vector<8x128xf32>
    %166 = arith.cmpf ogt, %164, %165 : vector<8x128xf32>
    %167 = arith.extui %166 : vector<8x128xi1> to vector<8x128xi32>
    %168 = arith.sitofp %167 : vector<8x128xi32> to vector<8x128xf32>
    %169 = arith.extui %166 : vector<8x128xi1> to vector<8x128xi32>
    %170 = arith.sitofp %169 : vector<8x128xi32> to vector<8x128xf32>
    %171 = arith.truncf %170 : vector<8x128xf32> to vector<8x128xbf16>
    %cst_50 = arith.constant 2.500000e-01 : f32
    %172 = vector.broadcast %cst_50 : f32 to vector<8x128xf32>
    %173 = arith.mulf %172, %164 : vector<8x128xf32>
    %cst_51 = arith.constant 1.000000e+00 : f32
    %174 = vector.broadcast %cst_51 : f32 to vector<8x128xf32>
    %175 = arith.subf %174, %168 : vector<8x128xf32>
    %176 = arith.mulf %173, %175 : vector<8x128xf32>
    %177 = vector.extract_strided_slice %127 {offsets = [24, 0], sizes = [8, 128], strides = [1, 1]} : vector<64x128xf32> to vector<8x128xf32>
    %178 = arith.addf %176, %177 : vector<8x128xf32>
    %cst_52 = arith.constant 2.000000e-01 : f32
    %179 = vector.broadcast %cst_52 : f32 to vector<8x128xf32>
    %180 = arith.cmpf ogt, %178, %179 : vector<8x128xf32>
    %181 = arith.extui %180 : vector<8x128xi1> to vector<8x128xi32>
    %182 = arith.sitofp %181 : vector<8x128xi32> to vector<8x128xf32>
    %183 = arith.extui %180 : vector<8x128xi1> to vector<8x128xi32>
    %184 = arith.sitofp %183 : vector<8x128xi32> to vector<8x128xf32>
    %185 = arith.truncf %184 : vector<8x128xf32> to vector<8x128xbf16>
    %cst_53 = arith.constant 2.500000e-01 : f32
    %186 = vector.broadcast %cst_53 : f32 to vector<8x128xf32>
    %187 = arith.mulf %186, %178 : vector<8x128xf32>
    %cst_54 = arith.constant 1.000000e+00 : f32
    %188 = vector.broadcast %cst_54 : f32 to vector<8x128xf32>
    %189 = arith.subf %188, %182 : vector<8x128xf32>
    %190 = arith.mulf %187, %189 : vector<8x128xf32>
    %191 = vector.extract_strided_slice %127 {offsets = [32, 0], sizes = [8, 128], strides = [1, 1]} : vector<64x128xf32> to vector<8x128xf32>
    %192 = arith.addf %190, %191 : vector<8x128xf32>
    %cst_55 = arith.constant 2.000000e-01 : f32
    %193 = vector.broadcast %cst_55 : f32 to vector<8x128xf32>
    %194 = arith.cmpf ogt, %192, %193 : vector<8x128xf32>
    %195 = arith.extui %194 : vector<8x128xi1> to vector<8x128xi32>
    %196 = arith.sitofp %195 : vector<8x128xi32> to vector<8x128xf32>
    %197 = arith.extui %194 : vector<8x128xi1> to vector<8x128xi32>
    %198 = arith.sitofp %197 : vector<8x128xi32> to vector<8x128xf32>
    %199 = arith.truncf %198 : vector<8x128xf32> to vector<8x128xbf16>
    %cst_56 = arith.constant 2.500000e-01 : f32
    %200 = vector.broadcast %cst_56 : f32 to vector<8x128xf32>
    %201 = arith.mulf %200, %192 : vector<8x128xf32>
    %cst_57 = arith.constant 1.000000e+00 : f32
    %202 = vector.broadcast %cst_57 : f32 to vector<8x128xf32>
    %203 = arith.subf %202, %196 : vector<8x128xf32>
    %204 = arith.mulf %201, %203 : vector<8x128xf32>
    %205 = vector.extract_strided_slice %127 {offsets = [40, 0], sizes = [8, 128], strides = [1, 1]} : vector<64x128xf32> to vector<8x128xf32>
    %206 = arith.addf %204, %205 : vector<8x128xf32>
    %cst_58 = arith.constant 2.000000e-01 : f32
    %207 = vector.broadcast %cst_58 : f32 to vector<8x128xf32>
    %208 = arith.cmpf ogt, %206, %207 : vector<8x128xf32>
    %209 = arith.extui %208 : vector<8x128xi1> to vector<8x128xi32>
    %210 = arith.sitofp %209 : vector<8x128xi32> to vector<8x128xf32>
    %211 = arith.extui %208 : vector<8x128xi1> to vector<8x128xi32>
    %212 = arith.sitofp %211 : vector<8x128xi32> to vector<8x128xf32>
    %213 = arith.truncf %212 : vector<8x128xf32> to vector<8x128xbf16>
    %cst_59 = arith.constant 2.500000e-01 : f32
    %214 = vector.broadcast %cst_59 : f32 to vector<8x128xf32>
    %215 = arith.mulf %214, %206 : vector<8x128xf32>
    %cst_60 = arith.constant 1.000000e+00 : f32
    %216 = vector.broadcast %cst_60 : f32 to vector<8x128xf32>
    %217 = arith.subf %216, %210 : vector<8x128xf32>
    %218 = arith.mulf %215, %217 : vector<8x128xf32>
    %219 = vector.extract_strided_slice %127 {offsets = [48, 0], sizes = [8, 128], strides = [1, 1]} : vector<64x128xf32> to vector<8x128xf32>
    %220 = arith.addf %218, %219 : vector<8x128xf32>
    %cst_61 = arith.constant 2.000000e-01 : f32
    %221 = vector.broadcast %cst_61 : f32 to vector<8x128xf32>
    %222 = arith.cmpf ogt, %220, %221 : vector<8x128xf32>
    %223 = arith.extui %222 : vector<8x128xi1> to vector<8x128xi32>
    %224 = arith.sitofp %223 : vector<8x128xi32> to vector<8x128xf32>
    %225 = arith.extui %222 : vector<8x128xi1> to vector<8x128xi32>
    %226 = arith.sitofp %225 : vector<8x128xi32> to vector<8x128xf32>
    %227 = arith.truncf %226 : vector<8x128xf32> to vector<8x128xbf16>
    %cst_62 = arith.constant 2.500000e-01 : f32
    %228 = vector.broadcast %cst_62 : f32 to vector<8x128xf32>
    %229 = arith.mulf %228, %220 : vector<8x128xf32>
    %cst_63 = arith.constant 1.000000e+00 : f32
    %230 = vector.broadcast %cst_63 : f32 to vector<8x128xf32>
    %231 = arith.subf %230, %224 : vector<8x128xf32>
    %232 = arith.mulf %229, %231 : vector<8x128xf32>
    %233 = vector.extract_strided_slice %127 {offsets = [56, 0], sizes = [8, 128], strides = [1, 1]} : vector<64x128xf32> to vector<8x128xf32>
    %234 = arith.addf %232, %233 : vector<8x128xf32>
    %cst_64 = arith.constant 2.000000e-01 : f32
    %235 = vector.broadcast %cst_64 : f32 to vector<8x128xf32>
    %236 = arith.cmpf ogt, %234, %235 : vector<8x128xf32>
    %237 = arith.extui %236 : vector<8x128xi1> to vector<8x128xi32>
    %238 = arith.sitofp %237 : vector<8x128xi32> to vector<8x128xf32>
    %239 = arith.truncf %238 : vector<8x128xf32> to vector<8x128xbf16>
    %240 = tpu.concatenate %143, %157, %171, %185, %199, %213, %227, %239 in 0 : vector<8x128xbf16>, vector<8x128xbf16>, vector<8x128xbf16>, vector<8x128xbf16>, vector<8x128xbf16>, vector<8x128xbf16>, vector<8x128xbf16>, vector<8x128xbf16> -> vector<64x128xbf16>
    %c2 = arith.constant 2 : index
    %c0_65 = arith.constant 0 : index
    %c0_66 = arith.constant 0 : index
    %241 = vector.load %arg1[%c2, %c0_65, %c0_66] : memref<3x128x128xbf16, #tpu.memory_space<vmem>>, vector<1x128x128xbf16>
    %242 = vector.shape_cast %241 : vector<1x128x128xbf16> to vector<128x128xbf16>
    %cst_67 = arith.constant dense<0.000000e+00> : vector<64x128xf32>
    %243 = tpu.matmul %240, %242, %cst_67 {dimension_numbers = #tpu.dot_dimension_numbers<[1], [0], [0], [1], [0, 0, 1, 1], [], []>} : vector<64x128xbf16>, vector<128x128xbf16>, vector<64x128xf32> -> vector<64x128xf32>
    %c2_68 = arith.constant 2 : index
    %c0_69 = arith.constant 0 : index
    %c0_70 = arith.constant 0 : index
    %244 = vector.load %arg2[%c2_68, %c0_69, %c0_70] : memref<3x1x128xf32, #tpu.memory_space<vmem>>, vector<1x1x128xf32>
    %245 = vector.shape_cast %244 : vector<1x1x128xf32> to vector<1x128xf32>
    %246 = vector.broadcast %245 : vector<1x128xf32> to vector<64x128xf32>
    %247 = arith.addf %243, %246 : vector<64x128xf32>
    %cst_71 = arith.constant 0.000000e+00 : f32
    %248 = vector.broadcast %cst_71 : f32 to vector<8x128xf32>
    %cst_72 = arith.constant 0.000000e+00 : f32
    %249 = vector.broadcast %cst_72 : f32 to vector<8x128xf32>
    %cst_73 = arith.constant 2.500000e-01 : f32
    %250 = vector.broadcast %cst_73 : f32 to vector<8x128xf32>
    %251 = arith.mulf %250, %248 : vector<8x128xf32>
    %cst_74 = arith.constant 1.000000e+00 : f32
    %252 = vector.broadcast %cst_74 : f32 to vector<8x128xf32>
    %253 = arith.subf %252, %249 : vector<8x128xf32>
    %254 = arith.mulf %251, %253 : vector<8x128xf32>
    %255 = vector.extract_strided_slice %247 {offsets = [0, 0], sizes = [8, 128], strides = [1, 1]} : vector<64x128xf32> to vector<8x128xf32>
    %256 = arith.addf %254, %255 : vector<8x128xf32>
    %cst_75 = arith.constant 2.000000e-01 : f32
    %257 = vector.broadcast %cst_75 : f32 to vector<8x128xf32>
    %258 = arith.cmpf ogt, %256, %257 : vector<8x128xf32>
    %259 = arith.extui %258 : vector<8x128xi1> to vector<8x128xi32>
    %260 = arith.sitofp %259 : vector<8x128xi32> to vector<8x128xf32>
    %261 = arith.extui %258 : vector<8x128xi1> to vector<8x128xi32>
    %262 = arith.sitofp %261 : vector<8x128xi32> to vector<8x128xf32>
    %263 = arith.truncf %262 : vector<8x128xf32> to vector<8x128xbf16>
    %cst_76 = arith.constant 2.500000e-01 : f32
    %264 = vector.broadcast %cst_76 : f32 to vector<8x128xf32>
    %265 = arith.mulf %264, %256 : vector<8x128xf32>
    %cst_77 = arith.constant 1.000000e+00 : f32
    %266 = vector.broadcast %cst_77 : f32 to vector<8x128xf32>
    %267 = arith.subf %266, %260 : vector<8x128xf32>
    %268 = arith.mulf %265, %267 : vector<8x128xf32>
    %269 = vector.extract_strided_slice %247 {offsets = [8, 0], sizes = [8, 128], strides = [1, 1]} : vector<64x128xf32> to vector<8x128xf32>
    %270 = arith.addf %268, %269 : vector<8x128xf32>
    %cst_78 = arith.constant 2.000000e-01 : f32
    %271 = vector.broadcast %cst_78 : f32 to vector<8x128xf32>
    %272 = arith.cmpf ogt, %270, %271 : vector<8x128xf32>
    %273 = arith.extui %272 : vector<8x128xi1> to vector<8x128xi32>
    %274 = arith.sitofp %273 : vector<8x128xi32> to vector<8x128xf32>
    %275 = arith.extui %272 : vector<8x128xi1> to vector<8x128xi32>
    %276 = arith.sitofp %275 : vector<8x128xi32> to vector<8x128xf32>
    %277 = arith.truncf %276 : vector<8x128xf32> to vector<8x128xbf16>
    %cst_79 = arith.constant 2.500000e-01 : f32
    %278 = vector.broadcast %cst_79 : f32 to vector<8x128xf32>
    %279 = arith.mulf %278, %270 : vector<8x128xf32>
    %cst_80 = arith.constant 1.000000e+00 : f32
    %280 = vector.broadcast %cst_80 : f32 to vector<8x128xf32>
    %281 = arith.subf %280, %274 : vector<8x128xf32>
    %282 = arith.mulf %279, %281 : vector<8x128xf32>
    %283 = vector.extract_strided_slice %247 {offsets = [16, 0], sizes = [8, 128], strides = [1, 1]} : vector<64x128xf32> to vector<8x128xf32>
    %284 = arith.addf %282, %283 : vector<8x128xf32>
    %cst_81 = arith.constant 2.000000e-01 : f32
    %285 = vector.broadcast %cst_81 : f32 to vector<8x128xf32>
    %286 = arith.cmpf ogt, %284, %285 : vector<8x128xf32>
    %287 = arith.extui %286 : vector<8x128xi1> to vector<8x128xi32>
    %288 = arith.sitofp %287 : vector<8x128xi32> to vector<8x128xf32>
    %289 = arith.extui %286 : vector<8x128xi1> to vector<8x128xi32>
    %290 = arith.sitofp %289 : vector<8x128xi32> to vector<8x128xf32>
    %291 = arith.truncf %290 : vector<8x128xf32> to vector<8x128xbf16>
    %cst_82 = arith.constant 2.500000e-01 : f32
    %292 = vector.broadcast %cst_82 : f32 to vector<8x128xf32>
    %293 = arith.mulf %292, %284 : vector<8x128xf32>
    %cst_83 = arith.constant 1.000000e+00 : f32
    %294 = vector.broadcast %cst_83 : f32 to vector<8x128xf32>
    %295 = arith.subf %294, %288 : vector<8x128xf32>
    %296 = arith.mulf %293, %295 : vector<8x128xf32>
    %297 = vector.extract_strided_slice %247 {offsets = [24, 0], sizes = [8, 128], strides = [1, 1]} : vector<64x128xf32> to vector<8x128xf32>
    %298 = arith.addf %296, %297 : vector<8x128xf32>
    %cst_84 = arith.constant 2.000000e-01 : f32
    %299 = vector.broadcast %cst_84 : f32 to vector<8x128xf32>
    %300 = arith.cmpf ogt, %298, %299 : vector<8x128xf32>
    %301 = arith.extui %300 : vector<8x128xi1> to vector<8x128xi32>
    %302 = arith.sitofp %301 : vector<8x128xi32> to vector<8x128xf32>
    %303 = arith.extui %300 : vector<8x128xi1> to vector<8x128xi32>
    %304 = arith.sitofp %303 : vector<8x128xi32> to vector<8x128xf32>
    %305 = arith.truncf %304 : vector<8x128xf32> to vector<8x128xbf16>
    %cst_85 = arith.constant 2.500000e-01 : f32
    %306 = vector.broadcast %cst_85 : f32 to vector<8x128xf32>
    %307 = arith.mulf %306, %298 : vector<8x128xf32>
    %cst_86 = arith.constant 1.000000e+00 : f32
    %308 = vector.broadcast %cst_86 : f32 to vector<8x128xf32>
    %309 = arith.subf %308, %302 : vector<8x128xf32>
    %310 = arith.mulf %307, %309 : vector<8x128xf32>
    %311 = vector.extract_strided_slice %247 {offsets = [32, 0], sizes = [8, 128], strides = [1, 1]} : vector<64x128xf32> to vector<8x128xf32>
    %312 = arith.addf %310, %311 : vector<8x128xf32>
    %cst_87 = arith.constant 2.000000e-01 : f32
    %313 = vector.broadcast %cst_87 : f32 to vector<8x128xf32>
    %314 = arith.cmpf ogt, %312, %313 : vector<8x128xf32>
    %315 = arith.extui %314 : vector<8x128xi1> to vector<8x128xi32>
    %316 = arith.sitofp %315 : vector<8x128xi32> to vector<8x128xf32>
    %317 = arith.extui %314 : vector<8x128xi1> to vector<8x128xi32>
    %318 = arith.sitofp %317 : vector<8x128xi32> to vector<8x128xf32>
    %319 = arith.truncf %318 : vector<8x128xf32> to vector<8x128xbf16>
    %cst_88 = arith.constant 2.500000e-01 : f32
    %320 = vector.broadcast %cst_88 : f32 to vector<8x128xf32>
    %321 = arith.mulf %320, %312 : vector<8x128xf32>
    %cst_89 = arith.constant 1.000000e+00 : f32
    %322 = vector.broadcast %cst_89 : f32 to vector<8x128xf32>
    %323 = arith.subf %322, %316 : vector<8x128xf32>
    %324 = arith.mulf %321, %323 : vector<8x128xf32>
    %325 = vector.extract_strided_slice %247 {offsets = [40, 0], sizes = [8, 128], strides = [1, 1]} : vector<64x128xf32> to vector<8x128xf32>
    %326 = arith.addf %324, %325 : vector<8x128xf32>
    %cst_90 = arith.constant 2.000000e-01 : f32
    %327 = vector.broadcast %cst_90 : f32 to vector<8x128xf32>
    %328 = arith.cmpf ogt, %326, %327 : vector<8x128xf32>
    %329 = arith.extui %328 : vector<8x128xi1> to vector<8x128xi32>
    %330 = arith.sitofp %329 : vector<8x128xi32> to vector<8x128xf32>
    %331 = arith.extui %328 : vector<8x128xi1> to vector<8x128xi32>
    %332 = arith.sitofp %331 : vector<8x128xi32> to vector<8x128xf32>
    %333 = arith.truncf %332 : vector<8x128xf32> to vector<8x128xbf16>
    %cst_91 = arith.constant 2.500000e-01 : f32
    %334 = vector.broadcast %cst_91 : f32 to vector<8x128xf32>
    %335 = arith.mulf %334, %326 : vector<8x128xf32>
    %cst_92 = arith.constant 1.000000e+00 : f32
    %336 = vector.broadcast %cst_92 : f32 to vector<8x128xf32>
    %337 = arith.subf %336, %330 : vector<8x128xf32>
    %338 = arith.mulf %335, %337 : vector<8x128xf32>
    %339 = vector.extract_strided_slice %247 {offsets = [48, 0], sizes = [8, 128], strides = [1, 1]} : vector<64x128xf32> to vector<8x128xf32>
    %340 = arith.addf %338, %339 : vector<8x128xf32>
    %cst_93 = arith.constant 2.000000e-01 : f32
    %341 = vector.broadcast %cst_93 : f32 to vector<8x128xf32>
    %342 = arith.cmpf ogt, %340, %341 : vector<8x128xf32>
    %343 = arith.extui %342 : vector<8x128xi1> to vector<8x128xi32>
    %344 = arith.sitofp %343 : vector<8x128xi32> to vector<8x128xf32>
    %345 = arith.extui %342 : vector<8x128xi1> to vector<8x128xi32>
    %346 = arith.sitofp %345 : vector<8x128xi32> to vector<8x128xf32>
    %347 = arith.truncf %346 : vector<8x128xf32> to vector<8x128xbf16>
    %cst_94 = arith.constant 2.500000e-01 : f32
    %348 = vector.broadcast %cst_94 : f32 to vector<8x128xf32>
    %349 = arith.mulf %348, %340 : vector<8x128xf32>
    %cst_95 = arith.constant 1.000000e+00 : f32
    %350 = vector.broadcast %cst_95 : f32 to vector<8x128xf32>
    %351 = arith.subf %350, %344 : vector<8x128xf32>
    %352 = arith.mulf %349, %351 : vector<8x128xf32>
    %353 = vector.extract_strided_slice %247 {offsets = [56, 0], sizes = [8, 128], strides = [1, 1]} : vector<64x128xf32> to vector<8x128xf32>
    %354 = arith.addf %352, %353 : vector<8x128xf32>
    %cst_96 = arith.constant 2.000000e-01 : f32
    %355 = vector.broadcast %cst_96 : f32 to vector<8x128xf32>
    %356 = arith.cmpf ogt, %354, %355 : vector<8x128xf32>
    %357 = arith.extui %356 : vector<8x128xi1> to vector<8x128xi32>
    %358 = arith.sitofp %357 : vector<8x128xi32> to vector<8x128xf32>
    %359 = arith.truncf %358 : vector<8x128xf32> to vector<8x128xbf16>
    %360 = tpu.concatenate %263, %277, %291, %305, %319, %333, %347, %359 in 0 : vector<8x128xbf16>, vector<8x128xbf16>, vector<8x128xbf16>, vector<8x128xbf16>, vector<8x128xbf16>, vector<8x128xbf16>, vector<8x128xbf16>, vector<8x128xbf16> -> vector<64x128xbf16>
    %c0_97 = arith.constant 0 : index
    %c0_98 = arith.constant 0 : index
    %361 = vector.load %arg3[%c0_97, %c0_98] : memref<64x128xbf16, #tpu.memory_space<vmem>>, vector<64x128xbf16>
    tpu.vector_store %arg3[%c0_97, %c0_98], %360 {strides = array<i32>} : memref<64x128xbf16, #tpu.memory_space<vmem>>, vector<64x128xbf16>,
    return
  }
}

</mosaic_0001>

<llo_original>
// kernel: tpu_custom_call.1
$region0: #{tpu_custom_call.1}
  #allocation0 [shape = 'u32[]', space=smem, size = 0x4, offset = 0x4, fixed_abs, tag = 'smem constant byte address 0x4 - core index']
  #allocation1 [shape = 'u32[144,128]{1,0:T(1,128)}', space=vmem, size = 0x12000, scoped, tag = 'internal scratch']
  %s0 = inlined_call_operand.hbm [shape: bf16[64,128], index: 0, kind: input, shape index: {}]
  %s1 = inlined_call_operand.hbm [shape: bf16[3,128,128], index: 1, kind: input, shape index: {}]
  %s2 = inlined_call_operand.vmem [shape: f32[3,1,128], index: 2, kind: input, shape index: {}]
  %s3 = inlined_call_operand.hbm [shape: bf16[64,128], index: 3, kind: output, shape index: {}]
  %s4 = sld [smem:[#allocation0]]
  $region30: #{tpu_custom_call.1} parent=0
    _
  %s6 = ssub.s32 1, %s4
  %s7 = scalar_select 0, %s6, %s4
  $region1: #{tpu_custom_call.1} parent=0
    #allocation2 [shape = 'u8[16384]{0}', space=vmem, size = 0x4000, scoped, tag = 'input window, operand 0, single buffered']
    #allocation3 [shape = 's32[1]{0}', space=sflag, size = 0x4, scoped, tag = 'scoped memory for tpu_custom_call.1']
    #allocation4 [shape = 's32[1]{0}', space=sflag, size = 0x4, scoped, tag = 'scoped memory for tpu_custom_call.1']
    #allocation5 [shape = 'u8[98304]{0}', space=vmem, size = 0x18000, scoped, tag = 'input window, operand 1, single buffered']
    #allocation6 [shape = 's32[1]{0}', space=sflag, size = 0x4, scoped, tag = 'scoped memory for tpu_custom_call.1']
    #allocation7 [shape = 'u8[16384]{0}', space=vmem, size = 0x4000, scoped, tag = 'output window, operand 0, single buffered']
    %8 = vsyncpa [#allocation3], 0
    %9 = vsyncpa [#allocation6], 0
    %10 = vsyncpa [#allocation4], 0
    // Predicated region
    $region2: #{tpu_custom_call.1} parent=1 // pred_check
      _
    $region3: #{tpu_custom_call.1} parent=1 // pred_check_branch
      %12 = sbr.rel (0) target = $region5
    $region4: #{tpu_custom_call.1} parent=1 // pred_region
      %s14 = ssub.s32 512, 512
      %15 = vsyncadd [#allocation3], %s14
      %s16 = sshll.u32 [#allocation2], 4
      %s17 = int_to_ptr.vmem [resolvable:$true] %s16
      %22 = dma.hbm_to_vmem [thread:$0]  %s0, 512, %s17, [#allocation3], 64, 64, 4
    $region5: #{tpu_custom_call.1} parent=1 // pred_fallthru
      _
    // Predicated region
    $region6: #{tpu_custom_call.1} parent=1 // pred_check
      _
    $region7: #{tpu_custom_call.1} parent=1 // pred_check_branch
      %24 = sbr.rel (0) target = $region9
    $region8: #{tpu_custom_call.1} parent=1 // pred_region
      %s26 = ssub.s32 3072, 3072
      %27 = vsyncadd [#allocation6], %s26
      %s28 = sshll.u32 [#allocation5], 4
      %s29 = int_to_ptr.vmem [resolvable:$true] %s28
      %34 = dma.hbm_to_vmem [thread:$0]  %s1, 3072, %s29, [#allocation6], 64, 64, 4
    $region9: #{tpu_custom_call.1} parent=1 // pred_fallthru
      _
    // Predicated region
    $region10: #{tpu_custom_call.1} parent=1 // pred_check
      _
    $region11: #{tpu_custom_call.1} parent=1 // pred_check_branch
      %36 = sbr.rel (0) target = $region13
    $region12: #{tpu_custom_call.1} parent=1 // pred_region
      _
    $region13: #{tpu_custom_call.1} parent=1 // pred_fallthru
      _
    // Predicated region
    $region14: #{tpu_custom_call.1} parent=1 // pred_check
      _
    $region15: #{tpu_custom_call.1} parent=1 // pred_check_branch
      %38 = sbr.rel (0) target = $region17
    $region16: #{tpu_custom_call.1} parent=1 // pred_region
      %39 = dma.done [#allocation3], 512
    $region17: #{tpu_custom_call.1} parent=1 // pred_fallthru
      _
    // Predicated region
    $region18: #{tpu_custom_call.1} parent=1 // pred_check
      _
    $region19: #{tpu_custom_call.1} parent=1 // pred_check_branch
      %41 = sbr.rel (0) target = $region21
    $region20: #{tpu_custom_call.1} parent=1 // pred_region
      %42 = dma.done [#allocation6], 3072
    $region21: #{tpu_custom_call.1} parent=1 // pred_fallthru
      _
    %v44 = vld [vmem:[#allocation2] sm:$0xf]
    %v45 = vld [vmem:[#allocation2 + $0x4] sm:$0xf]
    %v46 = vld [vmem:[#allocation2 + $0x8] sm:$0xf]
    %v47 = vld [vmem:[#allocation2 + $0xc] sm:$0xf]
    %v48 = vld [vmem:[#allocation2 + $0x10] sm:$0xf]
    %v49 = vld [vmem:[#allocation2 + $0x14] sm:$0xf]
    %v50 = vld [vmem:[#allocation2 + $0x18] sm:$0xf]
    %v51 = vld [vmem:[#allocation2 + $0x1c] sm:$0xf]
    %v52 = vld [vmem:[#allocation5] sm:$0xf]
    %v53 = vld [vmem:[#allocation5 + $0x4] sm:$0xf]
    %v54 = vld [vmem:[#allocation5 + $0x8] sm:$0xf]
    %v55 = vld [vmem:[#allocation5 + $0xc] sm:$0xf]
    %v56 = vld [vmem:[#allocation5 + $0x10] sm:$0xf]
    %v57 = vld [vmem:[#allocation5 + $0x14] sm:$0xf]
    %v58 = vld [vmem:[#allocation5 + $0x18] sm:$0xf]
    %v59 = vld [vmem:[#allocation5 + $0x1c] sm:$0xf]
    %v60 = vld [vmem:[#allocation5 + $0x20] sm:$0xf]
    %v61 = vld [vmem:[#allocation5 + $0x24] sm:$0xf]
    %v62 = vld [vmem:[#allocation5 + $0x28] sm:$0xf]
    %v63 = vld [vmem:[#allocation5 + $0x2c] sm:$0xf]
    %v64 = vld [vmem:[#allocation5 + $0x30] sm:$0xf]
    %v65 = vld [vmem:[#allocation5 + $0x34] sm:$0xf]
    %v66 = vld [vmem:[#allocation5 + $0x38] sm:$0xf]
    %v67 = vld [vmem:[#allocation5 + $0x3c] sm:$0xf]
    %v68 = vld [vmem:[%s2] sm:$0x1]
    %v70 = vlaneseq
    %v71 = vshrl.u32 %v70, 7
    %v72 = vsub.s32 0, %v71
    %v73 = vrot.slane %v68, %v72
    %v83 = vunpack.c.l.b16 %v44
    %v84 = vunpack.c.l.b16 %v45
    %v85 = vunpack.c.l.b16 %v46
    %v86 = vunpack.c.l.b16 %v47
    %v87 = vunpack.c.l.b16 %v48
    %v88 = vunpack.c.l.b16 %v49
    %v89 = vunpack.c.l.b16 %v50
    %v90 = vunpack.c.l.b16 %v51
    %v91 = vpack.c.b16 %v84, %v83
    %v92 = vpack.c.b16 %v86, %v85
    %v93 = vpack.c.b16 %v88, %v87
    %v94 = vpack.c.b16 %v90, %v89
    %v115 = vunpack.c.l.b16 %v52
    %v116 = vunpack.c.l.b16 %v53
    %v117 = vunpack.c.l.b16 %v54
    %v118 = vunpack.c.l.b16 %v55
    %v119 = vunpack.c.l.b16 %v56
    %v120 = vunpack.c.l.b16 %v57
    %v121 = vunpack.c.l.b16 %v58
    %v122 = vunpack.c.l.b16 %v59
    %v123 = vunpack.c.l.b16 %v60
    %v124 = vunpack.c.l.b16 %v61
    %v125 = vunpack.c.l.b16 %v62
    %v126 = vunpack.c.l.b16 %v63
    %v127 = vunpack.c.l.b16 %v64
    %v128 = vunpack.c.l.b16 %v65
    %v129 = vunpack.c.l.b16 %v66
    %v130 = vunpack.c.l.b16 %v67
    %v131 = vpack.c.b16 %v116, %v115
    %v132 = vpack.c.b16 %v118, %v117
    %v133 = vpack.c.b16 %v120, %v119
    %v134 = vpack.c.b16 %v122, %v121
    %v135 = vpack.c.b16 %v124, %v123
    %v136 = vpack.c.b16 %v126, %v125
    %v137 = vpack.c.b16 %v128, %v127
    %v138 = vpack.c.b16 %v130, %v129
    %147 = vmatprep.subr.bf16.mxu0 0
    %148 = vmatpush1.bf16.msra.mxu0 %v138
    %149 = vmatprep.subr.bf16.mxu0 0
    %150 = vmatpush1.bf16.msra.mxu0 %v137
    %151 = vmatprep.subr.bf16.mxu0 0
    %152 = vmatpush1.bf16.msra.mxu0 %v136
    %153 = vmatprep.subr.bf16.mxu0 0
    %154 = vmatpush1.bf16.msra.mxu0 %v135
    %155 = vmatprep.subr.bf16.mxu0 0
    %156 = vmatpush1.bf16.msra.mxu0 %v134
    %157 = vmatprep.subr.bf16.mxu0 0
    %158 = vmatpush1.bf16.msra.mxu0 %v133
    %159 = vmatprep.subr.bf16.mxu0 0
    %160 = vmatpush1.bf16.msra.mxu0 %v132
    %161 = vmatprep.subr.bf16.mxu0 0
    %162 = vmatpush1.bf16.msra.mxu0 %v131
    %163 = vmatprep.subr.bf16.mxu0 0
    %164 = vmatpush2.bf16.msra.mxu0 0
    %165 = vmatprep.subr.bf16.mxu0 0
    %166 = vmatpush2.bf16.msra.mxu0 0
    %167 = vmatprep.subr.bf16.mxu0 0
    %168 = vmatpush2.bf16.msra.mxu0 0
    %169 = vmatprep.subr.bf16.mxu0 0
    %170 = vmatpush2.bf16.msra.mxu0 0
    %171 = vmatprep.subr.bf16.mxu0 0
    %172 = vmatpush2.bf16.msra.mxu0 0
    %173 = vmatprep.subr.bf16.mxu0 0
    %174 = vmatpush2.bf16.msra.mxu0 0
    %175 = vmatprep.subr.bf16.mxu0 0
    %176 = vmatpush2.bf16.msra.mxu0 0
    %177 = vmatprep.subr.bf16.mxu0 0
    %178 = vmatpush2.bf16.msra.mxu0 0
    %179 = vmatprep.mubr.bf16.mxu0 0
    %180 = vmatmul.mubr.bf16.gmra.mxu0 %v91
    %v181 = vpop.f32.mrf.mxu0
    %v182 = vadd.f32 %v73, %v181
    %v183 = vpop.f32.mrf.mxu0
    %v184 = vpop.f32.mrf.mxu0
    %v185 = vadd.f32 %v73, %v184
    %v186 = vpop.f32.mrf.mxu0
    %187 = vmatprep.mubr.bf16.mxu0 0
    %188 = vmatmul.mubr.bf16.gmra.mxu0 %v92
    %v189 = vpop.f32.mrf.mxu0
    %v190 = vadd.f32 %v73, %v189
    %v191 = vpop.f32.mrf.mxu0
    %v192 = vpop.f32.mrf.mxu0
    %v193 = vadd.f32 %v73, %v192
    %v194 = vpop.f32.mrf.mxu0
    %195 = vmatprep.mubr.bf16.mxu0 0
    %196 = vmatmul.mubr.bf16.gmra.mxu0 %v93
    %v197 = vpop.f32.mrf.mxu0
    %v198 = vadd.f32 %v73, %v197
    %v199 = vpop.f32.mrf.mxu0
    %v200 = vpop.f32.mrf.mxu0
    %v201 = vadd.f32 %v73, %v200
    %v202 = vpop.f32.mrf.mxu0
    %203 = vmatprep.mubr.bf16.mxu0 0
    %204 = vmatmul.mubr.bf16.gmra.mxu0 %v94
    %v205 = vpop.f32.mrf.mxu0
    %v206 = vadd.f32 %v73, %v205
    %v207 = vpop.f32.mrf.mxu0
    %v208 = vpop.f32.mrf.mxu0
    %v209 = vadd.f32 %v73, %v208
    %v210 = vpop.f32.mrf.mxu0
    %211 = vdwg.mxu0
    %v212 = vadd.f32 %v182, 0.0
    %vm213 = vcmp.gt.f32.partialorder %v212, 0.2
    %v214 = vsel %vm213, 1, 0
    %v215 = vcvt.s32.f32 %v214
    %v216 = vpack.c.bf16 %v215, %v215
    %v217 = vmul.f32 %v212, 0.25
    %v218 = vsub.f32 1.0, %v215
    %v219 = vmul.f32 %v217, %v218
    %v220 = vadd.f32 %v219, %v185
    %vm221 = vcmp.gt.f32.partialorder %v220, 0.2
    %v222 = vsel %vm221, 1, 0
    %v223 = vcvt.s32.f32 %v222
    %v224 = vpack.c.bf16 %v223, %v223
    %v225 = vmul.f32 %v220, 0.25
    %v226 = vsub.f32 1.0, %v223
    %v227 = vmul.f32 %v225, %v226
    %v228 = vadd.f32 %v227, %v190
    %vm229 = vcmp.gt.f32.partialorder %v228, 0.2
    %v230 = vsel %vm229, 1, 0
    %v231 = vcvt.s32.f32 %v230
    %v232 = vpack.c.bf16 %v231, %v231
    %v233 = vmul.f32 %v228, 0.25
    %v234 = vsub.f32 1.0, %v231
    %v235 = vmul.f32 %v233, %v234
    %v236 = vadd.f32 %v235, %v193
    %vm237 = vcmp.gt.f32.partialorder %v236, 0.2
    %v238 = vsel %vm237, 1, 0
    %v239 = vcvt.s32.f32 %v238
    %v240 = vpack.c.bf16 %v239, %v239
    %v241 = vmul.f32 %v236, 0.25
    %v242 = vsub.f32 1.0, %v239
    %v243 = vmul.f32 %v241, %v242
    %v244 = vadd.f32 %v243, %v198
    %vm245 = vcmp.gt.f32.partialorder %v244, 0.2
    %v246 = vsel %vm245, 1, 0
    %v247 = vcvt.s32.f32 %v246
    %v248 = vpack.c.bf16 %v247, %v247
    %v249 = vmul.f32 %v244, 0.25
    %v250 = vsub.f32 1.0, %v247
    %v251 = vmul.f32 %v249, %v250
    %v252 = vadd.f32 %v251, %v201
    %vm253 = vcmp.gt.f32.partialorder %v252, 0.2
    %v254 = vsel %vm253, 1, 0
    %v255 = vcvt.s32.f32 %v254
    %v256 = vpack.c.bf16 %v255, %v255
    %v257 = vmul.f32 %v252, 0.25
    %v258 = vsub.f32 1.0, %v255
    %v259 = vmul.f32 %v257, %v258
    %v260 = vadd.f32 %v259, %v206
    %vm261 = vcmp.gt.f32.partialorder %v260, 0.2
    %v262 = vsel %vm261, 1, 0
    %v263 = vcvt.s32.f32 %v262
    %v264 = vpack.c.bf16 %v263, %v263
    %v265 = vmul.f32 %v260, 0.25
    %v266 = vsub.f32 1.0, %v263
    %v267 = vmul.f32 %v265, %v266
    %v268 = vadd.f32 %v267, %v209
    %vm269 = vcmp.gt.f32.partialorder %v268, 0.2
    %v270 = vsel %vm269, 1, 0
    %v271 = vcvt.s32.f32 %v270
    %v272 = vpack.c.bf16 %v271, %v271
    %v274 = vrot.slane %v224, 4
    %v276 = vrot.slane %v240, 4
    %v278 = vrot.slane %v256, 4
    %v280 = vrot.slane %v272, 4
    %vm281 = vcmask 1043456
    %v284 = vsel %vm281, %v216, %v274
    %v288 = vsel %vm281, %v232, %v276
    %v292 = vsel %vm281, %v248, %v278
    %v296 = vsel %vm281, %v264, %v280
    %s298 = scalar_lea.vmem [#allocation5], 64
    %v299 = vld [vmem:[%s298] sm:$0xf]
    %v300 = vld [vmem:[%s298 + $0x4] sm:$0xf]
    %v301 = vld [vmem:[%s298 + $0x8] sm:$0xf]
    %v302 = vld [vmem:[%s298 + $0xc] sm:$0xf]
    %v303 = vld [vmem:[%s298 + $0x10] sm:$0xf]
    %v304 = vld [vmem:[%s298 + $0x14] sm:$0xf]
    %v305 = vld [vmem:[%s298 + $0x18] sm:$0xf]
    %v306 = vld [vmem:[%s298 + $0x1c] sm:$0xf]
    %v307 = vld [vmem:[%s298 + $0x20] sm:$0xf]
    %v308 = vld [vmem:[%s298 + $0x24] sm:$0xf]
    %v309 = vld [vmem:[%s298 + $0x28] sm:$0xf]
    %v310 = vld [vmem:[%s298 + $0x2c] sm:$0xf]
    %v311 = vld [vmem:[%s298 + $0x30] sm:$0xf]
    %v312 = vld [vmem:[%s298 + $0x34] sm:$0xf]
    %v313 = vld [vmem:[%s298 + $0x38] sm:$0xf]
    %v314 = vld [vmem:[%s298 + $0x3c] sm:$0xf]
    %s315 = scalar_lea.vmem %s2, 1
    %v316 = vld [vmem:[%s315] sm:$0x1]
    %v318 = vlaneseq
    %v319 = vshrl.u32 %v318, 7
    %v320 = vsub.s32 0, %v319
    %v321 = vrot.slane %v316, %v320
    %v339 = vunpack.c.l.b16 %v299
    %v340 = vunpack.c.l.b16 %v300
    %v341 = vunpack.c.l.b16 %v301
    %v342 = vunpack.c.l.b16 %v302
    %v343 = vunpack.c.l.b16 %v303
    %v344 = vunpack.c.l.b16 %v304
    %v345 = vunpack.c.l.b16 %v305
    %v346 = vunpack.c.l.b16 %v306
    %v347 = vunpack.c.l.b16 %v307
    %v348 = vunpack.c.l.b16 %v308
    %v349 = vunpack.c.l.b16 %v309
    %v350 = vunpack.c.l.b16 %v310
    %v351 = vunpack.c.l.b16 %v311
    %v352 = vunpack.c.l.b16 %v312
    %v353 = vunpack.c.l.b16 %v313
    %v354 = vunpack.c.l.b16 %v314
    %v355 = vpack.c.b16 %v340, %v339
    %v356 = vpack.c.b16 %v342, %v341
    %v357 = vpack.c.b16 %v344, %v343
    %v358 = vpack.c.b16 %v346, %v345
    %v359 = vpack.c.b16 %v348, %v347
    %v360 = vpack.c.b16 %v350, %v349
    %v361 = vpack.c.b16 %v352, %v351
    %v362 = vpack.c.b16 %v354, %v353
    %371 = vmatprep.subr.bf16.mxu0 0
    %372 = vmatpush1.bf16.msra.mxu0 %v362
    %373 = vmatprep.subr.bf16.mxu0 0
    %374 = vmatpush1.bf16.msra.mxu0 %v361
    %375 = vmatprep.subr.bf16.mxu0 0
    %376 = vmatpush1.bf16.msra.mxu0 %v360
    %377 = vmatprep.subr.bf16.mxu0 0
    %378 = vmatpush1.bf16.msra.mxu0 %v359
    %379 = vmatprep.subr.bf16.mxu0 0
    %380 = vmatpush1.bf16.msra.mxu0 %v358
    %381 = vmatprep.subr.bf16.mxu0 0
    %382 = vmatpush1.bf16.msra.mxu0 %v357
    %383 = vmatprep.subr.bf16.mxu0 0
    %384 = vmatpush1.bf16.msra.mxu0 %v356
    %385 = vmatprep.subr.bf16.mxu0 0
    %386 = vmatpush1.bf16.msra.mxu0 %v355
    %387 = vmatprep.subr.bf16.mxu0 0
    %388 = vmatpush2.bf16.msra.mxu0 0
    %389 = vmatprep.subr.bf16.mxu0 0
    %390 = vmatpush2.bf16.msra.mxu0 0
    %391 = vmatprep.subr.bf16.mxu0 0
    %392 = vmatpush2.bf16.msra.mxu0 0
    %393 = vmatprep.subr.bf16.mxu0 0
    %394 = vmatpush2.bf16.msra.mxu0 0
    %395 = vmatprep.subr.bf16.mxu0 0
    %396 = vmatpush2.bf16.msra.mxu0 0
    %397 = vmatprep.subr.bf16.mxu0 0
    %398 = vmatpush2.bf16.msra.mxu0 0
    %399 = vmatprep.subr.bf16.mxu0 0
    %400 = vmatpush2.bf16.msra.mxu0 0
    %401 = vmatprep.subr.bf16.mxu0 0
    %402 = vmatpush2.bf16.msra.mxu0 0
    %403 = vmatprep.mubr.bf16.mxu0 0
    %404 = vmatmul.mubr.bf16.gmra.mxu0 %v284
    %v405 = vpop.f32.mrf.mxu0
    %v406 = vadd.f32 %v321, %v405
    %v407 = vpop.f32.mrf.mxu0
    %v408 = vpop.f32.mrf.mxu0
    %v409 = vadd.f32 %v321, %v408
    %v410 = vpop.f32.mrf.mxu0
    %411 = vmatprep.mubr.bf16.mxu0 0
    %412 = vmatmul.mubr.bf16.gmra.mxu0 %v288
    %v413 = vpop.f32.mrf.mxu0
    %v414 = vadd.f32 %v321, %v413
    %v415 = vpop.f32.mrf.mxu0
    %v416 = vpop.f32.mrf.mxu0
    %v417 = vadd.f32 %v321, %v416
    %v418 = vpop.f32.mrf.mxu0
    %419 = vmatprep.mubr.bf16.mxu0 0
    %420 = vmatmul.mubr.bf16.gmra.mxu0 %v292
    %v421 = vpop.f32.mrf.mxu0
    %v422 = vadd.f32 %v321, %v421
    %v423 = vpop.f32.mrf.mxu0
    %v424 = vpop.f32.mrf.mxu0
    %v425 = vadd.f32 %v321, %v424
    %v426 = vpop.f32.mrf.mxu0
    %427 = vmatprep.mubr.bf16.mxu0 0
    %428 = vmatmul.mubr.bf16.gmra.mxu0 %v296
    %v429 = vpop.f32.mrf.mxu0
    %v430 = vadd.f32 %v321, %v429
    %v431 = vpop.f32.mrf.mxu0
    %v432 = vpop.f32.mrf.mxu0
    %v433 = vadd.f32 %v321, %v432
    %v434 = vpop.f32.mrf.mxu0
    %435 = vdwg.mxu0
    %v436 = vadd.f32 %v406, 0.0
    %vm437 = vcmp.gt.f32.partialorder %v436, 0.2
    %v438 = vsel %vm437, 1, 0
    %v439 = vcvt.s32.f32 %v438
    %v440 = vpack.c.bf16 %v439, %v439
    %v441 = vmul.f32 %v436, 0.25
    %v442 = vsub.f32 1.0, %v439
    %v443 = vmul.f32 %v441, %v442
    %v444 = vadd.f32 %v443, %v409
    %vm445 = vcmp.gt.f32.partialorder %v444, 0.2
    %v446 = vsel %vm445, 1, 0
    %v447 = vcvt.s32.f32 %v446
    %v448 = vpack.c.bf16 %v447, %v447
    %v449 = vmul.f32 %v444, 0.25
    %v450 = vsub.f32 1.0, %v447
    %v451 = vmul.f32 %v449, %v450
    %v452 = vadd.f32 %v451, %v414
    %vm453 = vcmp.gt.f32.partialorder %v452, 0.2
    %v454 = vsel %vm453, 1, 0
    %v455 = vcvt.s32.f32 %v454
    %v456 = vpack.c.bf16 %v455, %v455
    %v457 = vmul.f32 %v452, 0.25
    %v458 = vsub.f32 1.0, %v455
    %v459 = vmul.f32 %v457, %v458
    %v460 = vadd.f32 %v459, %v417
    %vm461 = vcmp.gt.f32.partialorder %v460, 0.2
    %v462 = vsel %vm461, 1, 0
    %v463 = vcvt.s32.f32 %v462
    %v464 = vpack.c.bf16 %v463, %v463
    %v465 = vmul.f32 %v460, 0.25
    %v466 = vsub.f32 1.0, %v463
    %v467 = vmul.f32 %v465, %v466
    %v468 = vadd.f32 %v467, %v422
    %vm469 = vcmp.gt.f32.partialorder %v468, 0.2
    %v470 = vsel %vm469, 1, 0
    %v471 = vcvt.s32.f32 %v470
    %v472 = vpack.c.bf16 %v471, %v471
    %v473 = vmul.f32 %v468, 0.25
    %v474 = vsub.f32 1.0, %v471
    %v475 = vmul.f32 %v473, %v474
    %v476 = vadd.f32 %v475, %v425
    %vm477 = vcmp.gt.f32.partialorder %v476, 0.2
    %v478 = vsel %vm477, 1, 0
    %v479 = vcvt.s32.f32 %v478
    %v480 = vpack.c.bf16 %v479, %v479
    %v481 = vmul.f32 %v476, 0.25
    %v482 = vsub.f32 1.0, %v479
    %v483 = vmul.f32 %v481, %v482
    %v484 = vadd.f32 %v483, %v430
    %vm485 = vcmp.gt.f32.partialorder %v484, 0.2
    %v486 = vsel %vm485, 1, 0
    %v487 = vcvt.s32.f32 %v486
    %v488 = vpack.c.bf16 %v487, %v487
    %v489 = vmul.f32 %v484, 0.25
    %v490 = vsub.f32 1.0, %v487
    %v491 = vmul.f32 %v489, %v490
    %v492 = vadd.f32 %v491, %v433
    %vm493 = vcmp.gt.f32.partialorder %v492, 0.2
    %v494 = vsel %vm493, 1, 0
    %v495 = vcvt.s32.f32 %v494
    %v496 = vpack.c.bf16 %v495, %v495
    %v498 = vrot.slane %v448, 4
    %v500 = vrot.slane %v464, 4
    %v502 = vrot.slane %v480, 4
    %v504 = vrot.slane %v496, 4
    %v507 = vsel %vm281, %v440, %v498
    %v511 = vsel %vm281, %v456, %v500
    %v515 = vsel %vm281, %v472, %v502
    %v519 = vsel %vm281, %v488, %v504
    %s521 = scalar_lea.vmem [#allocation5], 128
    %v522 = vld [vmem:[%s521] sm:$0xf]
    %v523 = vld [vmem:[%s521 + $0x4] sm:$0xf]
    %v524 = vld [vmem:[%s521 + $0x8] sm:$0xf]
    %v525 = vld [vmem:[%s521 + $0xc] sm:$0xf]
    %v526 = vld [vmem:[%s521 + $0x10] sm:$0xf]
    %v527 = vld [vmem:[%s521 + $0x14] sm:$0xf]
    %v528 = vld [vmem:[%s521 + $0x18] sm:$0xf]
    %v529 = vld [vmem:[%s521 + $0x1c] sm:$0xf]
    %v530 = vld [vmem:[%s521 + $0x20] sm:$0xf]
    %v531 = vld [vmem:[%s521 + $0x24] sm:$0xf]
    %v532 = vld [vmem:[%s521 + $0x28] sm:$0xf]
    %v533 = vld [vmem:[%s521 + $0x2c] sm:$0xf]
    %v534 = vld [vmem:[%s521 + $0x30] sm:$0xf]
    %v535 = vld [vmem:[%s521 + $0x34] sm:$0xf]
    %v536 = vld [vmem:[%s521 + $0x38] sm:$0xf]
    %v537 = vld [vmem:[%s521 + $0x3c] sm:$0xf]
    %s538 = scalar_lea.vmem %s2, 2
    %v539 = vld [vmem:[%s538] sm:$0x1]
    %v541 = vlaneseq
    %v542 = vshrl.u32 %v541, 7
    %v543 = vsub.s32 0, %v542
    %v544 = vrot.slane %v539, %v543
    %v562 = vunpack.c.l.b16 %v522
    %v563 = vunpack.c.l.b16 %v523
    %v564 = vunpack.c.l.b16 %v524
    %v565 = vunpack.c.l.b16 %v525
    %v566 = vunpack.c.l.b16 %v526
    %v567 = vunpack.c.l.b16 %v527
    %v568 = vunpack.c.l.b16 %v528
    %v569 = vunpack.c.l.b16 %v529
    %v570 = vunpack.c.l.b16 %v530
    %v571 = vunpack.c.l.b16 %v531
    %v572 = vunpack.c.l.b16 %v532
    %v573 = vunpack.c.l.b16 %v533
    %v574 = vunpack.c.l.b16 %v534
    %v575 = vunpack.c.l.b16 %v535
    %v576 = vunpack.c.l.b16 %v536
    %v577 = vunpack.c.l.b16 %v537
    %v578 = vpack.c.b16 %v563, %v562
    %v579 = vpack.c.b16 %v565, %v564
    %v580 = vpack.c.b16 %v567, %v566
    %v581 = vpack.c.b16 %v569, %v568
    %v582 = vpack.c.b16 %v571, %v570
    %v583 = vpack.c.b16 %v573, %v572
    %v584 = vpack.c.b16 %v575, %v574
    %v585 = vpack.c.b16 %v577, %v576
    %594 = vmatprep.subr.bf16.mxu0 0
    %595 = vmatpush1.bf16.msra.mxu0 %v585
    %596 = vmatprep.subr.bf16.mxu0 0
    %597 = vmatpush1.bf16.msra.mxu0 %v584
    %598 = vmatprep.subr.bf16.mxu0 0
    %599 = vmatpush1.bf16.msra.mxu0 %v583
    %600 = vmatprep.subr.bf16.mxu0 0
    %601 = vmatpush1.bf16.msra.mxu0 %v582
    %602 = vmatprep.subr.bf16.mxu0 0
    %603 = vmatpush1.bf16.msra.mxu0 %v581
    %604 = vmatprep.subr.bf16.mxu0 0
    %605 = vmatpush1.bf16.msra.mxu0 %v580
    %606 = vmatprep.subr.bf16.mxu0 0
    %607 = vmatpush1.bf16.msra.mxu0 %v579
    %608 = vmatprep.subr.bf16.mxu0 0
    %609 = vmatpush1.bf16.msra.mxu0 %v578
    %610 = vmatprep.subr.bf16.mxu0 0
    %611 = vmatpush2.bf16.msra.mxu0 0
    %612 = vmatprep.subr.bf16.mxu0 0
    %613 = vmatpush2.bf16.msra.mxu0 0
    %614 = vmatprep.subr.bf16.mxu0 0
    %615 = vmatpush2.bf16.msra.mxu0 0
    %616 = vmatprep.subr.bf16.mxu0 0
    %617 = vmatpush2.bf16.msra.mxu0 0
    %618 = vmatprep.subr.bf16.mxu0 0
    %619 = vmatpush2.bf16.msra.mxu0 0
    %620 = vmatprep.subr.bf16.mxu0 0
    %621 = vmatpush2.bf16.msra.mxu0 0
    %622 = vmatprep.subr.bf16.mxu0 0
    %623 = vmatpush2.bf16.msra.mxu0 0
    %624 = vmatprep.subr.bf16.mxu0 0
    %625 = vmatpush2.bf16.msra.mxu0 0
    %626 = vmatprep.mubr.bf16.mxu0 0
    %627 = vmatmul.mubr.bf16.gmra.mxu0 %v507
    %v628 = vpop.f32.mrf.mxu0
    %v629 = vadd.f32 %v544, %v628
    %v630 = vpop.f32.mrf.mxu0
    %v631 = vpop.f32.mrf.mxu0
    %v632 = vadd.f32 %v544, %v631
    %v633 = vpop.f32.mrf.mxu0
    %634 = vmatprep.mubr.bf16.mxu0 0
    %635 = vmatmul.mubr.bf16.gmra.mxu0 %v511
    %v636 = vpop.f32.mrf.mxu0
    %v637 = vadd.f32 %v544, %v636
    %v638 = vpop.f32.mrf.mxu0
    %v639 = vpop.f32.mrf.mxu0
    %v640 = vadd.f32 %v544, %v639
    %v641 = vpop.f32.mrf.mxu0
    %642 = vmatprep.mubr.bf16.mxu0 0
    %643 = vmatmul.mubr.bf16.gmra.mxu0 %v515
    %v644 = vpop.f32.mrf.mxu0
    %v645 = vadd.f32 %v544, %v644
    %v646 = vpop.f32.mrf.mxu0
    %v647 = vpop.f32.mrf.mxu0
    %v648 = vadd.f32 %v544, %v647
    %v649 = vpop.f32.mrf.mxu0
    %650 = vmatprep.mubr.bf16.mxu0 0
    %651 = vmatmul.mubr.bf16.gmra.mxu0 %v519
    %v652 = vpop.f32.mrf.mxu0
    %v653 = vadd.f32 %v544, %v652
    %v654 = vpop.f32.mrf.mxu0
    %v655 = vpop.f32.mrf.mxu0
    %v656 = vadd.f32 %v544, %v655
    %v657 = vpop.f32.mrf.mxu0
    %658 = vdwg.mxu0
    %v659 = vadd.f32 %v629, 0.0
    %vm660 = vcmp.gt.f32.partialorder %v659, 0.2
    %v661 = vsel %vm660, 1, 0
    %v662 = vcvt.s32.f32 %v661
    %v663 = vpack.c.bf16 %v662, %v662
    %v664 = vmul.f32 %v659, 0.25
    %v665 = vsub.f32 1.0, %v662
    %v666 = vmul.f32 %v664, %v665
    %v667 = vadd.f32 %v666, %v632
    %vm668 = vcmp.gt.f32.partialorder %v667, 0.2
    %v669 = vsel %vm668, 1, 0
    %v670 = vcvt.s32.f32 %v669
    %v671 = vpack.c.bf16 %v670, %v670
    %v672 = vmul.f32 %v667, 0.25
    %v673 = vsub.f32 1.0, %v670
    %v674 = vmul.f32 %v672, %v673
    %v675 = vadd.f32 %v674, %v637
    %vm676 = vcmp.gt.f32.partialorder %v675, 0.2
    %v677 = vsel %vm676, 1, 0
    %v678 = vcvt.s32.f32 %v677
    %v679 = vpack.c.bf16 %v678, %v678
    %v680 = vmul.f32 %v675, 0.25
    %v681 = vsub.f32 1.0, %v678
    %v682 = vmul.f32 %v680, %v681
    %v683 = vadd.f32 %v682, %v640
    %vm684 = vcmp.gt.f32.partialorder %v683, 0.2
    %v685 = vsel %vm684, 1, 0
    %v686 = vcvt.s32.f32 %v685
    %v687 = vpack.c.bf16 %v686, %v686
    %v688 = vmul.f32 %v683, 0.25
    %v689 = vsub.f32 1.0, %v686
    %v690 = vmul.f32 %v688, %v689
    %v691 = vadd.f32 %v690, %v645
    %vm692 = vcmp.gt.f32.partialorder %v691, 0.2
    %v693 = vsel %vm692, 1, 0
    %v694 = vcvt.s32.f32 %v693
    %v695 = vpack.c.bf16 %v694, %v694
    %v696 = vmul.f32 %v691, 0.25
    %v697 = vsub.f32 1.0, %v694
    %v698 = vmul.f32 %v696, %v697
    %v699 = vadd.f32 %v698, %v648
    %vm700 = vcmp.gt.f32.partialorder %v699, 0.2
    %v701 = vsel %vm700, 1, 0
    %v702 = vcvt.s32.f32 %v701
    %v703 = vpack.c.bf16 %v702, %v702
    %v704 = vmul.f32 %v699, 0.25
    %v705 = vsub.f32 1.0, %v702
    %v706 = vmul.f32 %v704, %v705
    %v707 = vadd.f32 %v706, %v653
    %vm708 = vcmp.gt.f32.partialorder %v707, 0.2
    %v709 = vsel %vm708, 1, 0
    %v710 = vcvt.s32.f32 %v709
    %v711 = vpack.c.bf16 %v710, %v710
    %v712 = vmul.f32 %v707, 0.25
    %v713 = vsub.f32 1.0, %v710
    %v714 = vmul.f32 %v712, %v713
    %v715 = vadd.f32 %v714, %v656
    %vm716 = vcmp.gt.f32.partialorder %v715, 0.2
    %v717 = vsel %vm716, 1, 0
    %v718 = vcvt.s32.f32 %v717
    %v719 = vpack.c.bf16 %v718, %v718
    %v721 = vrot.slane %v671, 4
    %v723 = vrot.slane %v687, 4
    %v725 = vrot.slane %v703, 4
    %v727 = vrot.slane %v719, 4
    %v730 = vsel %vm281, %v663, %v721
    %v733 = vsel %vm281, %v679, %v723
    %v736 = vsel %vm281, %v695, %v725
    %v739 = vsel %vm281, %v711, %v727
    %v744 = vunpack.c.l.b16 %v730
    %v745 = vunpack.c.h.b16 %v730
    %v746 = vunpack.c.l.b16 %v733
    %v747 = vunpack.c.h.b16 %v733
    %v748 = vunpack.c.l.b16 %v736
    %v749 = vunpack.c.h.b16 %v736
    %v750 = vunpack.c.l.b16 %v739
    %v751 = vunpack.c.h.b16 %v739
    %v752 = vpack.c.b16 %v744, %v744
    %v753 = vpack.c.b16 %v745, %v745
    %v754 = vpack.c.b16 %v746, %v746
    %v755 = vpack.c.b16 %v747, %v747
    %v756 = vpack.c.b16 %v748, %v748
    %v757 = vpack.c.b16 %v749, %v749
    %v758 = vpack.c.b16 %v750, %v750
    %v759 = vpack.c.b16 %v751, %v751
    %768 = vst [vmem:[#allocation7] sm:$0xf] %v752
    %769 = vst [vmem:[#allocation7 + $0x4] sm:$0xf] %v753
    %770 = vst [vmem:[#allocation7 + $0x8] sm:$0xf] %v754
    %771 = vst [vmem:[#allocation7 + $0xc] sm:$0xf] %v755
    %772 = vst [vmem:[#allocation7 + $0x10] sm:$0xf] %v756
    %773 = vst [vmem:[#allocation7 + $0x14] sm:$0xf] %v757
    %774 = vst [vmem:[#allocation7 + $0x18] sm:$0xf] %v758
    %775 = vst [vmem:[#allocation7 + $0x1c] sm:$0xf] %v759
    // Predicated region
    $region22: #{tpu_custom_call.1} parent=1 // pred_check
      _
    $region23: #{tpu_custom_call.1} parent=1 // pred_check_branch
      %777 = sbr.rel (0) target = $region25
    $region24: #{tpu_custom_call.1} parent=1 // pred_region
      %s779 = ssub.s32 512, 512
      %780 = vsyncadd [#allocation4], %s779
      %s781 = sshll.u32 [#allocation7], 4
      %s782 = int_to_ptr.vmem [resolvable:$true] %s781
      %787 = dma.vmem_to_hbm [thread:$0]  %s782, 512, %s3, [#allocation4], 64, 64, 4
    $region25: #{tpu_custom_call.1} parent=1 // pred_fallthru
      _
    // Predicated region
    $region26: #{tpu_custom_call.1} parent=1 // pred_check
      _
    $region27: #{tpu_custom_call.1} parent=1 // pred_check_branch
      %789 = sbr.rel (0) target = $region29
    $region28: #{tpu_custom_call.1} parent=1 // pred_region
      %790 = dma.done [#allocation4], 512
    $region29: #{tpu_custom_call.1} parent=1 // pred_fallthru
      _
    %791 = vsyncpa [#allocation3], 1
    %792 = vsyncpa [#allocation6], 1
    %793 = vsyncpa [#allocation4], 1

</llo_original>
